<compile_context>
chip_gen: v5e
topology: v5e:2x2
jax: 0.10.0
libtpu: 0.0.40
codegen_flags: <defaults>
</compile_context>

<pallas_src>
import functools

import jax
import jax.numpy as jnp
from jax import lax
from jax.experimental import pallas as pl
from jax.experimental.pallas import tpu as pltpu


def _round_up(x, m):
    return ((x + m - 1) // m) * m


def _ffn_kernel(*refs, n_layers, apply_residual, apply_layer_norm, ln_eps):
    """Channel-major FFN body. Every ref is (channels, tokens), tokens on lanes.

    refs = (x, w0, b0, w1, b1, ..., [gamma, beta,] out)
      x     : (D0, tile_m)
      w_i   : (C_out_i, C_in_i)
      b_i   : (C_out_i, 1)
      gamma : (Dn, 1), beta : (Dn, 1)   (only when apply_layer_norm)
      out   : (Dn, tile_m)
    """
    x_ref = refs[0]
    out_ref = refs[-1]

    x = x_ref[...].astype(jnp.float32)                     # (D0, tile_m)
    h = x
    for i in range(n_layers):
        w = refs[1 + 2 * i][...].astype(jnp.float32)       # (C_out, C_in)
        b = refs[2 + 2 * i][...].astype(jnp.float32)       # (C_out, 1)
        # Lane-dense N = tile_m feeds the MXU; f32 accumulation.
        h = jnp.dot(w, h, preferred_element_type=jnp.float32) + b
        if i < n_layers - 1:
            h = jnp.tanh(h)
            # TODO(synk): dropout between layers (dropout=None here; eval-mode no-op).

    if apply_residual:
        h = h + x

    if apply_layer_norm:
        gamma = refs[1 + 2 * n_layers][...].astype(jnp.float32)   # (Dn, 1)
        beta = refs[2 + 2 * n_layers][...].astype(jnp.float32)    # (Dn, 1)
        mean = jnp.mean(h, axis=0, keepdims=True)                 # (1, tile_m)
        var = jnp.mean((h - mean) * (h - mean), axis=0, keepdims=True)
        h = (h - mean) * lax.rsqrt(var + ln_eps)
        h = h * gamma + beta

    out_ref[...] = h.astype(out_ref.dtype)


def positionwise_feed_forward(x, weights, biases, gamma, beta, *,
                              residual=False, layer_norm=False, reshape=False,
                              tile_m=512, vmem_limit_bytes=48 * 1024 * 1024):
    """x: (B, L, dims[0]) f32. weights[i]: (dims[i], dims[i+1]), biases[i]: (dims[i+1],)."""
    B, L, D0 = x.shape
    Dn = weights[-1].shape[1]
    M = B * L

    dims_match = (D0 == Dn)
    apply_residual = residual and dims_match
    apply_layer_norm = layer_norm and dims_match

    LANE = 128
    # Cap the token tile so the widest f32 intermediate (max_width x tile_m) stays
    # within a few MiB (avoids vreg spill; fits v7x's smaller 64 MiB VMEM).
    # TODO(synk): for very wide hidden dims (>= 2048) also chunk the hidden axis
    # inside the kernel instead of only shrinking tile_m.
    max_width = max([D0, Dn] + [int(w.shape[1]) for w in weights])
    budget = 8 * 1024 * 1024
    cap = max(LANE, (budget // (max_width * 4)) // LANE * LANE)
    tile_m = min(max(LANE, (tile_m // LANE) * LANE), cap, _round_up(M, LANE))
    M_pad = _round_up(M, tile_m)

    # Channel-major, lane-dense layout: tokens live on the lane (last) axis.
    # Padded token columns are independent garbage and get sliced off at the end.
    x_t = x.reshape(M, D0).T                      # (D0, M)
    if M_pad != M:
        x_t = jnp.pad(x_t, ((0, 0), (0, M_pad - M)))

    args = [x_t]
    in_specs = [pl.BlockSpec((D0, tile_m), lambda i: (0, i))]
    for w, b in zip(weights, biases):
        w_cm = w.T                                # (C_out, C_in)
        b_cm = b.reshape(-1, 1)                   # (C_out, 1)
        args += [w_cm, b_cm]
        in_specs += [
            pl.BlockSpec(w_cm.shape, lambda i: (0, 0)),
            pl.BlockSpec(b_cm.shape, lambda i: (0, 0)),
        ]
    if apply_layer_norm:
        g_cm = gamma.reshape(-1, 1)
        bt_cm = beta.reshape(-1, 1)
        args += [g_cm, bt_cm]
        in_specs += [
            pl.BlockSpec(g_cm.shape, lambda i: (0, 0)),
            pl.BlockSpec(bt_cm.shape, lambda i: (0, 0)),
        ]

    kernel = functools.partial(
        _ffn_kernel,
        n_layers=len(weights),
        apply_residual=apply_residual,
        apply_layer_norm=apply_layer_norm,
        ln_eps=1e-5,
    )

    out_t = pl.pallas_call(
        kernel,
        out_shape=jax.ShapeDtypeStruct((Dn, M_pad), x.dtype),
        grid_spec=pltpu.PrefetchScalarGridSpec(
            num_scalar_prefetch=0,
            grid=(M_pad // tile_m,),
            in_specs=in_specs,
            out_specs=pl.BlockSpec((Dn, tile_m), lambda i: (0, i)),
        ),
        compiler_params=pltpu.CompilerParams(
            dimension_semantics=("parallel",),
            vmem_limit_bytes=vmem_limit_bytes,
        ),
    )(*args)

    out = out_t[:, :M].T.reshape(B, L, Dn)
    if reshape:
        out = out.reshape(B, -1, 1)
    return out


def _reference(x, weights, biases, gamma, beta, *, residual, layer_norm):
    B, L, D0 = x.shape
    h = x.astype(jnp.float32)
    for i, (w, b) in enumerate(zip(weights, biases)):
        h = jnp.einsum("blc,cd->bld", h, w) + b
        if i < len(weights) - 1:
            h = jnp.tanh(h)
    if D0 == weights[-1].shape[1]:
        if residual:
            h = h + x
        if layer_norm:
            mean = jnp.mean(h, axis=-1, keepdims=True)
            var = jnp.var(h, axis=-1, keepdims=True)
            h = (h - mean) / jnp.sqrt(var + 1e-5)
            h = h * gamma + beta
    return h


if __name__ == "__main__":
    # Module config: dims=[4, 32, 4], use_bias=True, residual=True, layer_norm=True,
    # dropout=None, reshape=False -> two Conv1d(kernel=1) layers with tanh in between.
    dims = [4, 32, 4]
    B, L = 2, 8

    key = jax.random.PRNGKey(0)
    keys = jax.random.split(key, 2 * (len(dims) - 1) + 1)

    weights, biases = [], []
    for i in range(len(dims) - 1):
        fan_in = dims[i]
        bound = 1.0 / jnp.sqrt(fan_in)  # PyTorch Conv1d default init bound
        w = jax.random.uniform(keys[2 * i], (dims[i], dims[i + 1]),
                               minval=-bound, maxval=bound, dtype=jnp.float32)
        b = jax.random.uniform(keys[2 * i + 1], (dims[i + 1],),
                               minval=-bound, maxval=bound, dtype=jnp.float32)
        weights.append(w)
        biases.append(b)

    gamma = jnp.ones((dims[-1],), jnp.float32)   # nn.LayerNorm default affine params
    beta = jnp.zeros((dims[-1],), jnp.float32)

    x = jax.random.normal(keys[-1], (B, L, dims[0]), dtype=jnp.float32)

    out = positionwise_feed_forward(
        x, weights, biases, gamma, beta,
        residual=True, layer_norm=True, reshape=False)
    out = jax.block_until_ready(out)

    ref = _reference(x, weights, biases, gamma, beta, residual=True, layer_norm=True)
    assert out.shape == (B, L, dims[-1]), out.shape
    assert jnp.allclose(out, ref, atol=1e-5, rtol=1e-5), float(jnp.max(jnp.abs(out - ref)))

    print("KERNEL_OK")
</pallas_src>

<mosaic_0001>
module attributes {stable_mosaic.version = 11 : i64} {
  func.func @_ffn_kernel(%arg0: i32, %arg1: memref<4x128xf32, #tpu.memory_space<vmem>>, %arg2: memref<32x4xf32, #tpu.memory_space<vmem>>, %arg3: memref<32x1xf32, #tpu.memory_space<vmem>>, %arg4: memref<4x32xf32, #tpu.memory_space<vmem>>, %arg5: memref<4x1xf32, #tpu.memory_space<vmem>>, %arg6: memref<4x1xf32, #tpu.memory_space<vmem>>, %arg7: memref<4x1xf32, #tpu.memory_space<vmem>>, %arg8: memref<4x128xf32, #tpu.memory_space<vmem>>) attributes {dimension_semantics = [#tpu.dimension_semantics<parallel>], iteration_bounds = array<i64: 1>, scalar_prefetch = 0 : i64, scratch_operands = 0 : i64, tpu.core_type = #tpu.core_type<tc>, window_params = [{transform_indices = @transform_0, window_bounds = array<i64: 4, 128>}, {pipeline_mode = #tpu.pipeline_mode<synchronous>, transform_indices = @transform_1, window_bounds = array<i64: 32, 4>}, {pipeline_mode = #tpu.pipeline_mode<synchronous>, transform_indices = @transform_2, window_bounds = array<i64: 32, 1>}, {pipeline_mode = #tpu.pipeline_mode<synchronous>, transform_indices = @transform_3, window_bounds = array<i64: 4, 32>}, {pipeline_mode = #tpu.pipeline_mode<synchronous>, transform_indices = @transform_4, window_bounds = array<i64: 4, 1>}, {pipeline_mode = #tpu.pipeline_mode<synchronous>, transform_indices = @transform_5, window_bounds = array<i64: 4, 1>}, {pipeline_mode = #tpu.pipeline_mode<synchronous>, transform_indices = @transform_6, window_bounds = array<i64: 4, 1>}, {transform_indices = @transform_7, window_bounds = array<i64: 4, 128>}]} {
    %c0 = arith.constant 0 : index
    %c0_0 = arith.constant 0 : index
    %0 = vector.load %arg1[%c0, %c0_0] : memref<4x128xf32, #tpu.memory_space<vmem>>, vector<4x128xf32>
    %c0_1 = arith.constant 0 : index
    %c0_2 = arith.constant 0 : index
    %1 = vector.load %arg2[%c0_1, %c0_2] : memref<32x4xf32, #tpu.memory_space<vmem>>, vector<32x4xf32>
    %c0_3 = arith.constant 0 : index
    %c0_4 = arith.constant 0 : index
    %2 = vector.load %arg3[%c0_3, %c0_4] : memref<32x1xf32, #tpu.memory_space<vmem>>, vector<32x1xf32>
    %cst = arith.constant dense<0.000000e+00> : vector<32x128xf32>
    %3 = tpu.matmul %1, %0, %cst {dimension_numbers = #tpu.dot_dimension_numbers<[1], [0], [0], [1], [0, 0, 1, 1], [], []>} : vector<32x4xf32>, vector<4x128xf32>, vector<32x128xf32> -> vector<32x128xf32>
    %4 = vector.broadcast %2 : vector<32x1xf32> to vector<32x128xf32>
    %5 = arith.addf %3, %4 : vector<32x128xf32>
    %6 = math.tanh %5 : vector<32x128xf32>
    %c0_5 = arith.constant 0 : index
    %c0_6 = arith.constant 0 : index
    %7 = vector.load %arg4[%c0_5, %c0_6] : memref<4x32xf32, #tpu.memory_space<vmem>>, vector<4x32xf32>
    %c0_7 = arith.constant 0 : index
    %c0_8 = arith.constant 0 : index
    %8 = vector.load %arg5[%c0_7, %c0_8] : memref<4x1xf32, #tpu.memory_space<vmem>>, vector<4x1xf32>
    %cst_9 = arith.constant dense<0.000000e+00> : vector<4x128xf32>
    %9 = tpu.matmul %7, %6, %cst_9 {dimension_numbers = #tpu.dot_dimension_numbers<[1], [0], [0], [1], [0, 0, 1, 1], [], []>} : vector<4x32xf32>, vector<32x128xf32>, vector<4x128xf32> -> vector<4x128xf32>
    %10 = vector.broadcast %8 : vector<4x1xf32> to vector<4x128xf32>
    %11 = arith.addf %9, %10 : vector<4x128xf32>
    %12 = arith.addf %11, %0 : vector<4x128xf32>
    %c0_10 = arith.constant 0 : index
    %c0_11 = arith.constant 0 : index
    %13 = vector.load %arg6[%c0_10, %c0_11] : memref<4x1xf32, #tpu.memory_space<vmem>>, vector<4x1xf32>
    %c0_12 = arith.constant 0 : index
    %c0_13 = arith.constant 0 : index
    %14 = vector.load %arg7[%c0_12, %c0_13] : memref<4x1xf32, #tpu.memory_space<vmem>>, vector<4x1xf32>
    %cst_14 = arith.constant dense<0.000000e+00> : vector<128xf32>
    %15 = vector.multi_reduction <add>, %12, %cst_14 [0] : vector<4x128xf32> to vector<128xf32>
    %16 = vector.shape_cast %15 : vector<128xf32> to vector<1x128xf32>
    %cst_15 = arith.constant 4.000000e+00 : f32
    %17 = vector.broadcast %cst_15 : f32 to vector<1x128xf32>
    %18 = arith.divf %16, %17 : vector<1x128xf32>
    %19 = vector.broadcast %18 : vector<1x128xf32> to vector<4x128xf32>
    %20 = arith.subf %12, %19 : vector<4x128xf32>
    %21 = vector.broadcast %18 : vector<1x128xf32> to vector<4x128xf32>
    %22 = arith.subf %12, %21 : vector<4x128xf32>
    %23 = arith.mulf %20, %22 : vector<4x128xf32>
    %cst_16 = arith.constant dense<0.000000e+00> : vector<128xf32>
    %24 = vector.multi_reduction <add>, %23, %cst_16 [0] : vector<4x128xf32> to vector<128xf32>
    %25 = vector.shape_cast %24 : vector<128xf32> to vector<1x128xf32>
    %cst_17 = arith.constant 4.000000e+00 : f32
    %26 = vector.broadcast %cst_17 : f32 to vector<1x128xf32>
    %27 = arith.divf %25, %26 : vector<1x128xf32>
    %28 = vector.broadcast %18 : vector<1x128xf32> to vector<4x128xf32>
    %29 = arith.subf %12, %28 : vector<4x128xf32>
    %cst_18 = arith.constant 9.99999974E-6 : f32
    %30 = vector.broadcast %cst_18 : f32 to vector<1x128xf32>
    %31 = arith.addf %27, %30 : vector<1x128xf32>
    %32 = math.rsqrt %31 : vector<1x128xf32>
    %33 = vector.broadcast %32 : vector<1x128xf32> to vector<4x128xf32>
    %34 = arith.mulf %29, %33 : vector<4x128xf32>
    %35 = vector.broadcast %13 : vector<4x1xf32> to vector<4x128xf32>
    %36 = arith.mulf %34, %35 : vector<4x128xf32>
    %37 = vector.broadcast %14 : vector<4x1xf32> to vector<4x128xf32>
    %38 = arith.addf %36, %37 : vector<4x128xf32>
    %c0_19 = arith.constant 0 : index
    %c0_20 = arith.constant 0 : index
    %39 = vector.load %arg8[%c0_19, %c0_20] : memref<4x128xf32, #tpu.memory_space<vmem>>, vector<4x128xf32>
    tpu.vector_store %arg8[%c0_19, %c0_20], %38 {strides = array<i32>} : memref<4x128xf32, #tpu.memory_space<vmem>>, vector<4x128xf32>,
    return
  }
  func.func @transform_0(%arg0: i32) -> (i32, i32) {
    %c0_i32 = arith.constant 0 : i32
    %c0_i32_0 = arith.constant 0 : i32
    return %c0_i32, %arg0 : i32, i32
  }
  func.func @transform_1(%arg0: i32) -> (i32, i32) {
    %c0_i32 = arith.constant 0 : i32
    %c0_i32_0 = arith.constant 0 : i32
    %c0_i32_1 = arith.constant 0 : i32
    return %c0_i32, %c0_i32_0 : i32, i32
  }
  func.func @transform_2(%arg0: i32) -> (i32, i32) {
    %c0_i32 = arith.constant 0 : i32
    %c0_i32_0 = arith.constant 0 : i32
    %c0_i32_1 = arith.constant 0 : i32
    return %c0_i32, %c0_i32_0 : i32, i32
  }
  func.func @transform_3(%arg0: i32) -> (i32, i32) {
    %c0_i32 = arith.constant 0 : i32
    %c0_i32_0 = arith.constant 0 : i32
    %c0_i32_1 = arith.constant 0 : i32
    return %c0_i32, %c0_i32_0 : i32, i32
  }
  func.func @transform_4(%arg0: i32) -> (i32, i32) {
    %c0_i32 = arith.constant 0 : i32
    %c0_i32_0 = arith.constant 0 : i32
    %c0_i32_1 = arith.constant 0 : i32
    return %c0_i32, %c0_i32_0 : i32, i32
  }
  func.func @transform_5(%arg0: i32) -> (i32, i32) {
    %c0_i32 = arith.constant 0 : i32
    %c0_i32_0 = arith.constant 0 : i32
    %c0_i32_1 = arith.constant 0 : i32
    return %c0_i32, %c0_i32_0 : i32, i32
  }
  func.func @transform_6(%arg0: i32) -> (i32, i32) {
    %c0_i32 = arith.constant 0 : i32
    %c0_i32_0 = arith.constant 0 : i32
    %c0_i32_1 = arith.constant 0 : i32
    return %c0_i32, %c0_i32_0 : i32, i32
  }
  func.func @transform_7(%arg0: i32) -> (i32, i32) {
    %c0_i32 = arith.constant 0 : i32
    %c0_i32_0 = arith.constant 0 : i32
    return %c0_i32, %arg0 : i32, i32
  }
}

</mosaic_0001>

<llo_original>
// kernel: tpu_custom_call.1
$region0: #{tpu_custom_call.1}
  #allocation0 [shape = 'u32[]', space=smem, size = 0x4, offset = 0x4, fixed_abs, tag = 'smem constant byte address 0x4 - core index']
  #allocation1 [shape = 'u32[72,128]{1,0:T(1,128)}', space=vmem, size = 0x9000, scoped, tag = 'internal scratch']
  %s0 = inlined_call_operand.vmem [shape: f32[4,128], index: 0, kind: input, shape index: {}]
  %s1 = inlined_call_operand.vmem [shape: f32[32,4], index: 1, kind: input, shape index: {}]
  %s2 = inlined_call_operand.vmem [shape: f32[32,1], index: 2, kind: input, shape index: {}]
  %s3 = inlined_call_operand.vmem [shape: f32[4,32], index: 3, kind: input, shape index: {}]
  %s4 = inlined_call_operand.vmem [shape: f32[4,1], index: 4, kind: input, shape index: {}]
  %s5 = inlined_call_operand.vmem [shape: f32[4,1], index: 5, kind: input, shape index: {}]
  %s6 = inlined_call_operand.vmem [shape: f32[4,1], index: 6, kind: input, shape index: {}]
  %s7 = inlined_call_operand.hbm [shape: f32[4,128], index: 7, kind: output, shape index: {}]
  %s8 = sld [smem:[#allocation0]]
  $region38: #{tpu_custom_call.1} parent=0
    _
  %s10 = ssub.s32 1, %s8
  %s11 = scalar_select 0, %s10, %s8
  $region1: #{tpu_custom_call.1} parent=0
    #allocation2 [shape = 'u8[2048]{0}', space=vmem, size = 0x800, scoped, tag = 'output window, operand 0, single buffered']
    #allocation3 [shape = 's32[1]{0}', space=sflag, size = 0x4, scoped, tag = 'scoped memory for tpu_custom_call.1']
    %12 = vsyncpa [#allocation3], 0
    // Predicated region
    $region2: #{tpu_custom_call.1} parent=1 // pred_check
      _
    $region3: #{tpu_custom_call.1} parent=1 // pred_check_branch
      %14 = sbr.rel (0) target = $region5
    $region4: #{tpu_custom_call.1} parent=1 // pred_region
      _
    $region5: #{tpu_custom_call.1} parent=1 // pred_fallthru
      _
    // Predicated region
    $region6: #{tpu_custom_call.1} parent=1 // pred_check
      _
    $region7: #{tpu_custom_call.1} parent=1 // pred_check_branch
      %16 = sbr.rel (0) target = $region9
    $region8: #{tpu_custom_call.1} parent=1 // pred_region
      _
    $region9: #{tpu_custom_call.1} parent=1 // pred_fallthru
      _
    // Predicated region
    $region10: #{tpu_custom_call.1} parent=1 // pred_check
      _
    $region11: #{tpu_custom_call.1} parent=1 // pred_check_branch
      %18 = sbr.rel (0) target = $region13
    $region12: #{tpu_custom_call.1} parent=1 // pred_region
      _
    $region13: #{tpu_custom_call.1} parent=1 // pred_fallthru
      _
    // Predicated region
    $region14: #{tpu_custom_call.1} parent=1 // pred_check
      _
    $region15: #{tpu_custom_call.1} parent=1 // pred_check_branch
      %20 = sbr.rel (0) target = $region17
    $region16: #{tpu_custom_call.1} parent=1 // pred_region
      _
    $region17: #{tpu_custom_call.1} parent=1 // pred_fallthru
      _
    // Predicated region
    $region18: #{tpu_custom_call.1} parent=1 // pred_check
      _
    $region19: #{tpu_custom_call.1} parent=1 // pred_check_branch
      %22 = sbr.rel (0) target = $region21
    $region20: #{tpu_custom_call.1} parent=1 // pred_region
      _
    $region21: #{tpu_custom_call.1} parent=1 // pred_fallthru
      _
    // Predicated region
    $region22: #{tpu_custom_call.1} parent=1 // pred_check
      _
    $region23: #{tpu_custom_call.1} parent=1 // pred_check_branch
      %24 = sbr.rel (0) target = $region25
    $region24: #{tpu_custom_call.1} parent=1 // pred_region
      _
    $region25: #{tpu_custom_call.1} parent=1 // pred_fallthru
      _
    // Predicated region
    $region26: #{tpu_custom_call.1} parent=1 // pred_check
      _
    $region27: #{tpu_custom_call.1} parent=1 // pred_check_branch
      %26 = sbr.rel (0) target = $region29
    $region28: #{tpu_custom_call.1} parent=1 // pred_region
      _
    $region29: #{tpu_custom_call.1} parent=1 // pred_fallthru
      _
    %v27 = vld [vmem:[%s0] sm:$0xf]
    %v28 = vld [vmem:[%s1] sm:$0xff]
    %v29 = vld [vmem:[%s1 + $0x8] sm:$0xff]
    %v30 = vld [vmem:[%s1 + $0x10] sm:$0xff]
    %v31 = vld [vmem:[%s1 + $0x18] sm:$0xff]
    %v32 = vld [vmem:[%s2] sm:$0xff]
    %v33 = vld [vmem:[%s2 + $0x8] sm:$0xff]
    %v34 = vld [vmem:[%s2 + $0x10] sm:$0xff]
    %v35 = vld [vmem:[%s2 + $0x18] sm:$0xff]
    %37 = vset.pattern.permute.xlu0 0
    %38 = vperm.xlu0 %37, %v32
    %v39 = vpop.permute.xlu0 %38
    %42 = vset.pattern.permute.xlu0 0
    %43 = vperm.xlu0 %42, %v33
    %v44 = vpop.permute.xlu0 %43
    %47 = vset.pattern.permute.xlu0 0
    %48 = vperm.xlu0 %47, %v34
    %v49 = vpop.permute.xlu0 %48
    %52 = vset.pattern.permute.xlu0 0
    %53 = vperm.xlu0 %52, %v35
    %v54 = vpop.permute.xlu0 %53
    %vm56 = vcmask 31744
    %v58 = vsel %vm56, %v28, 0
    %v61 = vsel %vm56, %v29, 0
    %v64 = vsel %vm56, %v30, 0
    %v67 = vsel %vm56, %v31, 0
    %vm69 = vcmask 1043456
    %v71 = vsel %vm69, %v27, 0
    %73 = vmatpush.msra.mxu0 0.0
    %74 = vmatpush.msra.mxu0 0.0
    %75 = vmatpush.msra.mxu0 0.0
    %76 = vmatpush.msra.mxu0 0.0
    %77 = vmatpush.msra.mxu0 0.0
    %78 = vmatpush.msra.mxu0 0.0
    %79 = vmatpush.msra.mxu0 0.0
    %80 = vmatpush.msra.mxu0 0.0
    %81 = vmatpush.msra.mxu0 0.0
    %82 = vmatpush.msra.mxu0 0.0
    %83 = vmatpush.msra.mxu0 0.0
    %84 = vmatpush.msra.mxu0 0.0
    %85 = vmatpush.msra.mxu0 0.0
    %86 = vmatpush.msra.mxu0 0.0
    %87 = vmatpush.msra.mxu0 0.0
    %88 = vmatpush.msra.mxu0 %v71
    %89 = vmatmul.f32.gmra.mxu0 %v58
    %v90 = vpop.f32.mrf.mxu0
    %v91 = vadd.f32 %v39, %v90
    %92 = vmatmul.f32.gmra.mxu0 %v61
    %v93 = vpop.f32.mrf.mxu0
    %v94 = vadd.f32 %v44, %v93
    %95 = vmatmul.f32.gmra.mxu0 %v64
    %v96 = vpop.f32.mrf.mxu0
    %v97 = vadd.f32 %v49, %v96
    %98 = vmatmul.f32.gmra.mxu0 %v67
    %v99 = vpop.f32.mrf.mxu0
    %v100 = vadd.f32 %v54, %v99
    %101 = vdwg.mxu0
    %v102 = vtanh.pop %v91
    %v103 = vtanh.pop %v94
    %v104 = vtanh.pop %v97
    %v105 = vtanh.pop %v100
    %v106 = vld [vmem:[%s3] sm:$0xf]
    %v107 = vld [vmem:[%s4] sm:$0xf]
    %109 = vset.pattern.permute.xlu0 0
    %110 = vperm.xlu0 %109, %v107
    %v111 = vpop.permute.xlu0 %110
    %vm113 = vcmask 261120
    %v115 = vsel %vm113, %v106, 0
    %117 = vmatpush.msra.mxu0 0.0
    %118 = vmatpush.msra.mxu0 0.0
    %119 = vmatpush.msra.mxu0 0.0
    %120 = vmatpush.msra.mxu0 0.0
    %121 = vmatpush.msra.mxu0 0.0
    %122 = vmatpush.msra.mxu0 0.0
    %123 = vmatpush.msra.mxu0 0.0
    %124 = vmatpush.msra.mxu0 0.0
    %125 = vmatpush.msra.mxu0 0.0
    %126 = vmatpush.msra.mxu0 0.0
    %127 = vmatpush.msra.mxu0 0.0
    %128 = vmatpush.msra.mxu0 0.0
    %129 = vmatpush.msra.mxu0 %v105
    %130 = vmatpush.msra.mxu0 %v104
    %131 = vmatpush.msra.mxu0 %v103
    %132 = vmatpush.msra.mxu0 %v102
    %133 = vmatmul.f32.gmra.mxu0 %v115
    %v134 = vpop.f32.mrf.mxu0
    %v135 = vadd.f32 %v111, %v134
    %136 = vdwg.mxu0
    %v137 = vadd.f32 %v135, %v27
    %v138 = vld [vmem:[%s5] sm:$0xf]
    %v139 = vld [vmem:[%s6] sm:$0xf]
    %v140 = vsel %vm69, %v137, 0.0
    %v141 = vrot.slane %v140, 4
    %v142 = vadd.f32 %v140, %v141
    %v143 = vrot.slane %v142, 2
    %v144 = vadd.f32 %v142, %v143
    %v145 = vrot.slane %v144, 1
    %v146 = vadd.f32 %v144, %v145
    %v147 = vrcp.pop 4.0
    %v148 = vmul.f32 4.0, %v147
    %v149 = vsub.f32 1.0, %v148
    %v150 = vmul.f32 %v147, %v149
    %v151 = vadd.f32 %v147, %v150
    %vm152 = vweird.f32 %v147
    %v153 = vsel %vm152, %v147, %v151
    %v154 = vmul.f32 %v146, %v153
    %v155 = vsub.f32 %v137, %v154
    %v156 = vmul.f32 %v155, %v155
    %v157 = vsel %vm69, %v156, 0.0
    %v158 = vrot.slane %v157, 4
    %v159 = vadd.f32 %v157, %v158
    %v160 = vrot.slane %v159, 2
    %v161 = vadd.f32 %v159, %v160
    %v162 = vrot.slane %v161, 1
    %v163 = vadd.f32 %v161, %v162
    %v164 = vmul.f32 %v163, %v153
    %v165 = vadd.f32 %v164, 1e-05
    %v166 = vrsqrt.pop %v165
    %v167 = vmul.f32 %v166, %v165
    %v168 = vmul.f32 %v167, %v166
    %v169 = vmul.f32 0.5, %v168
    %v170 = vsub.f32 1.5, %v169
    %v171 = vmul.f32 %v166, %v170
    %vm172 = vweird.f32 %v165
    %vm173 = vweird.f32 %v166
    %vm174 = vmor %vm172, %vm173
    %v175 = vsel %vm174, %v166, %v171
    %v176 = vmul.f32 %v155, %v175
    %178 = vset.pattern.permute.xlu0 0
    %179 = vperm.xlu0 %178, %v138
    %v180 = vpop.permute.xlu0 %179
    %v182 = vmul.f32 %v176, %v180
    %184 = vset.pattern.permute.xlu0 0
    %185 = vperm.xlu0 %184, %v139
    %v186 = vpop.permute.xlu0 %185
    %v188 = vadd.f32 %v182, %v186
    %189 = vst [vmem:[#allocation2] sm:$0xf] %v188
    // Predicated region
    $region30: #{tpu_custom_call.1} parent=1 // pred_check
      _
    $region31: #{tpu_custom_call.1} parent=1 // pred_check_branch
      %191 = sbr.rel (0) target = $region33
    $region32: #{tpu_custom_call.1} parent=1 // pred_region
      %193 = vsyncadd [#allocation3], 0
      %s195 = sshll.u32 [#allocation2], 4
      %s196 = int_to_ptr.vmem [resolvable:$true] %s195
      %s197 = sshll.u32 %s7, 4
      %s198 = int_to_ptr.hbm [resolvable:$true] %s197
      %200 = dma.vmem_to_hbm [thread:$0]  %s196, 64, %s198, [#allocation3]
    $region33: #{tpu_custom_call.1} parent=1 // pred_fallthru
      _
    // Predicated region
    $region34: #{tpu_custom_call.1} parent=1 // pred_check
      _
    $region35: #{tpu_custom_call.1} parent=1 // pred_check_branch
      %202 = sbr.rel (0) target = $region37
    $region36: #{tpu_custom_call.1} parent=1 // pred_region
      %204 = dma.done [#allocation3], 64
    $region37: #{tpu_custom_call.1} parent=1 // pred_fallthru
      _
    %205 = vsyncpa [#allocation3], 1

</llo_original>
